<compile_context>
chip_gen: v7x
topology: tpu7x:2x2x1
jax: 0.10.0
libtpu: 0.0.40
codegen_flags: <defaults>
</compile_context>

<pallas_src>
import functools

import jax
import jax.numpy as jnp
from jax import lax
from jax.experimental import pallas as pl
from jax.experimental.pallas import tpu as pltpu


def bert_embeddings_kernel(ids_ref,    # (B*S,) int32, SMEM (scalar prefetch)
                           word_hbm,   # (V, H) word-embedding table, HBM (ANY)
                           pos_ref,    # (P, H) full position table, VMEM-resident
                           tok_ref,    # (T, H) token-type table, VMEM
                           gb_ref,     # (2, H) packed [gamma; beta], VMEM
                           tid_ref,    # (seq_tile, 1) int32 token-type ids, VMEM
                           o_ref,      # (seq_tile, H) output tile
                           wbuf,       # (2*seq_tile, H) VMEM gather scratch (2 slots)
                           sem,        # (2,) DMA semaphores, one per slot
                           *, eps, seq_len, seq_tile):
    b = pl.program_id(0)
    j = pl.program_id(1)
    nj = pl.num_programs(1)
    slot = lax.rem(j, 2)

    def issue_gather(bb, jj, sl):
        # Start seq_tile overlapped row DMAs: word_hbm[row] -> wbuf slot `sl`.
        base = bb * seq_len + jj * seq_tile
        dst = sl * seq_tile

        @pl.loop(0, seq_tile)
        def _(t):
            row = ids_ref[base + t]                       # SMEM scalar read
            pltpu.make_async_copy(word_hbm.at[row],
                                  wbuf.at[dst + t],
                                  sem.at[sl]).start()

    # Prime the pipeline at the start of each sequence (always lands in slot 0).
    @pl.when(j == 0)
    def _():
        issue_gather(b, 0, slot)

    # Prefetch the NEXT tile's rows into the other slot BEFORE computing on the
    # current one (this also reads the SMEM ids before the wait below).
    @pl.when(j + 1 < nj)
    def _():
        issue_gather(b, j + 1, 1 - slot)

    # Single wait describing the full (seq_tile, H) transfer of the current slot.
    # (All row copies of a slot share that slot's semaphore and have identical
    # byte counts, so one whole-tile descriptor drains them all.)
    off = pl.multiple_of(slot * seq_tile, seq_tile)
    pltpu.make_async_copy(word_hbm.at[pl.ds(0, seq_tile)],
                          wbuf.at[pl.ds(off, seq_tile)],
                          sem.at[slot]).wait()

    # ---- sum of the three embeddings (f32 accumulation) ----
    pos = pos_ref[pl.ds(pl.multiple_of(j * seq_tile, seq_tile), seq_tile), :]
    x = wbuf[pl.ds(off, seq_tile), :].astype(jnp.float32) + pos.astype(jnp.float32)

    tids = tid_ref[...]                                   # (seq_tile, 1) int32
    tok = tok_ref[...].astype(jnp.float32)                # (T, H); T tiny (2 for BERT)
    for k in range(tok.shape[0]):                         # static, vectorized select-add
        x = jnp.where(tids == k, x + tok[k:k + 1, :], x)

    # ---- BertLayerNorm (TF style, eps inside sqrt), two-pass like the module ----
    mean = jnp.mean(x, axis=-1, keepdims=True)
    xc = x - mean
    var = jnp.mean(xc * xc, axis=-1, keepdims=True)
    inv = lax.rsqrt(var + eps)                            # EUP rsqrt, not a VALU divide
    gb = gb_ref[...].astype(jnp.float32)
    out = xc * inv * gb[0:1, :] + gb[1:2, :]

    # TODO(synk): training-mode dropout (hidden_dropout_prob) would need
    # pltpu.prng_* masking; identity here (inference/eval semantics).
    o_ref[...] = out.astype(o_ref.dtype)


def bert_embeddings(input_ids, word_table, pos_table, tok_table, gamma, beta,
                    token_type_ids=None, *, eps=1e-12, seq_tile=None):
    """input_ids: [B, S] int; word_table: [V, H]; pos_table: [P, H] (P >= S);
    tok_table: [T, H]; gamma/beta: [H]."""
    B, S = input_ids.shape
    V, H = word_table.shape
    P = pos_table.shape[0]
    T = tok_table.shape[0]
    assert P >= S and pos_table.shape[1] == H

    out_dtype = word_table.dtype
    itm = jnp.dtype(out_dtype).itemsize

    if token_type_ids is None:
        token_type_ids = jnp.zeros((B, S), dtype=jnp.int32)
    # TODO(synk): arbitrary user-supplied position_ids would need the same DMA
    # gather as the word table; the module default (arange per sequence) is what
    # the VMEM-resident position table + contiguous slice implements here.

    # Sublane granularity of the (seq_tile, H) blocks depends on the dtype.
    sub = 8 * max(1, 4 // itm)                  # 8 for f32, 16 for bf16
    if seq_tile is None:
        cap = 512 if itm >= 4 else 1024
        seq_tile = S if S <= cap else cap
    assert S % seq_tile == 0, "seq length must be divisible by the token tile"
    assert seq_tile == S or seq_tile % sub == 0
    assert seq_tile <= V    # the collapsed wait descriptor slices the word table

    ids = input_ids.astype(jnp.int32).reshape(-1)            # 1D SMEM (no 2D padding)
    tids3 = token_type_ids.astype(jnp.int32).reshape(B, S, 1)
    gb = jnp.stack([gamma, beta], axis=0)                     # packed (2, H) params

    # Conservative VMEM budget: resident tables (double-buffer counted), gather
    # scratch (2 slots), double-buffered output tile, f32 LN temporaries.
    vmem_est = (2 * P * H + 2 * T * H + 4 * H) * itm
    vmem_est += 2 * seq_tile * H * itm            # wbuf gather scratch
    vmem_est += 2 * seq_tile * H * itm            # output double buffer
    vmem_est += 2 * seq_tile * 4                  # token-type ids
    vmem_est += 8 * seq_tile * H * 4              # f32 temporaries headroom
    vmem_limit = int(min(64 * 1024 * 1024, max(vmem_est + (8 << 20), 32 << 20)))

    kernel = functools.partial(bert_embeddings_kernel, eps=eps,
                               seq_len=S, seq_tile=seq_tile)
    out = pl.pallas_call(
        kernel,
        out_shape=jax.ShapeDtypeStruct((B, S, H), out_dtype),
        grid_spec=pltpu.PrefetchScalarGridSpec(
            num_scalar_prefetch=1,                         # flattened ids -> SMEM
            grid=(B, S // seq_tile),
            in_specs=[
                pl.BlockSpec(memory_space=pl.ANY),                        # word table (HBM)
                pl.BlockSpec((P, H), lambda b, j, ids_s: (0, 0)),         # position table, fetched once
                pl.BlockSpec((T, H), lambda b, j, ids_s: (0, 0)),         # token-type table
                pl.BlockSpec((2, H), lambda b, j, ids_s: (0, 0)),         # gamma/beta
                pl.BlockSpec((None, seq_tile, 1), lambda b, j, ids_s: (b, j, 0)),  # token-type ids
            ],
            out_specs=pl.BlockSpec((None, seq_tile, H),
                                   lambda b, j, ids_s: (b, j, 0)),
            scratch_shapes=[
                pltpu.VMEM((2 * seq_tile, H), word_table.dtype),   # double-buffered gather dst
                pltpu.SemaphoreType.DMA((2,)),                      # one DMA sem per slot
            ],
        ),
        compiler_params=pltpu.CompilerParams(
            dimension_semantics=("parallel", "arbitrary"),
            vmem_limit_bytes=vmem_limit),
    )(ids, word_table, pos_table, tok_table, gb, tids3)
    return out


if __name__ == "__main__":
    # Small config: batch=2, seq=8, hidden=128 (lane-dense), vocab=64,
    # max_position_embeddings=16, type_vocab_size=2.
    B, S, H = 2, 8, 128
    VOCAB, MAX_POS, TYPE_VOCAB = 64, 16, 2
    eps = 1e-12

    key = jax.random.PRNGKey(0)
    k1, k2, k3, k4, k5, k6, k7 = jax.random.split(key, 7)

    word_table = jax.random.normal(k1, (VOCAB, H), dtype=jnp.float32)
    word_table = word_table.at[0].set(0.0)            # padding_idx=0 row
    pos_table = jax.random.normal(k2, (MAX_POS, H), dtype=jnp.float32)
    tok_table = jax.random.normal(k3, (TYPE_VOCAB, H), dtype=jnp.float32)
    gamma = 1.0 + 0.1 * jax.random.normal(k4, (H,), dtype=jnp.float32)
    beta = 0.1 * jax.random.normal(k5, (H,), dtype=jnp.float32)

    input_ids = jax.random.randint(k6, (B, S), 0, VOCAB, dtype=jnp.int32)
    token_type_ids = jax.random.randint(k7, (B, S), 0, TYPE_VOCAB, dtype=jnp.int32)

    out = bert_embeddings(input_ids, word_table, pos_table, tok_table, gamma, beta,
                          token_type_ids=token_type_ids, eps=eps)
    out = jax.block_until_ready(out)

    # Pure-JAX reference (mirrors the PyTorch module forward in eval mode)
    position_ids = jnp.broadcast_to(jnp.arange(S, dtype=jnp.int32), (B, S))
    x = word_table[input_ids] + pos_table[position_ids] + tok_table[token_type_ids]
    u = x.mean(-1, keepdims=True)
    s = ((x - u) ** 2).mean(-1, keepdims=True)
    ref = gamma * ((x - u) / jnp.sqrt(s + eps)) + beta

    assert out.shape == ref.shape
    assert jnp.allclose(out, ref, atol=1e-4, rtol=1e-4), (
        f"mismatch vs reference: max abs err {jnp.max(jnp.abs(out - ref))}")
    print("KERNEL_OK")
</pallas_src>

<mosaic_0001>
module attributes {stable_mosaic.version = 11 : i64} {
  func.func @bert_embeddings_kernel(%arg0: i32, %arg1: i32, %arg2: memref<16xi32, #tpu.memory_space<smem>>, %arg3: memref<64x128xf32, #tpu.memory_space<any>>, %arg4: memref<16x128xf32, #tpu.memory_space<vmem>>, %arg5: memref<2x128xf32, #tpu.memory_space<vmem>>, %arg6: memref<2x128xf32, #tpu.memory_space<vmem>>, %arg7: memref<1x8x1xi32, #tpu.memory_space<vmem>>, %arg8: memref<1x8x128xf32, #tpu.memory_space<vmem>>, %arg9: memref<16x128xf32, #tpu.memory_space<vmem>>, %arg10: memref<2x!tpu.dma_semaphore, #tpu.memory_space<semaphore_mem>>) attributes {dimension_semantics = [#tpu.dimension_semantics<parallel>, #tpu.dimension_semantics<arbitrary>], iteration_bounds = array<i64: 2, 1>, scalar_prefetch = 1 : i64, scratch_operands = 2 : i64, tpu.core_type = #tpu.core_type<tc>, window_params = [{}, {pipeline_mode = #tpu.pipeline_mode<synchronous>, transform_indices = @transform_1, window_bounds = array<i64: 16, 128>}, {pipeline_mode = #tpu.pipeline_mode<synchronous>, transform_indices = @transform_2, window_bounds = array<i64: 2, 128>}, {pipeline_mode = #tpu.pipeline_mode<synchronous>, transform_indices = @transform_3, window_bounds = array<i64: 2, 128>}, {transform_indices = @transform_4, window_bounds = array<i64: 1, 8, 1>}, {transform_indices = @transform_5, window_bounds = array<i64: 1, 8, 128>}]} {
    %c2_i32 = arith.constant 2 : i32
    %0 = arith.remsi %arg1, %c2_i32 : i32
    %c0_i32 = arith.constant 0 : i32
    %1 = arith.cmpi eq, %arg1, %c0_i32 : i32
    %2 = arith.extui %1 : i1 to i32
    %c0_i32_0 = arith.constant 0 : i32
    %3 = arith.cmpi ne, %2, %c0_i32_0 : i32
    scf.if %3 {
      %c8_i32_24 = arith.constant 8 : i32
      %66 = arith.muli %arg0, %c8_i32_24 : i32
      %c0_i32_25 = arith.constant 0 : i32
      %67 = arith.addi %66, %c0_i32_25 : i32
      %c8_i32_26 = arith.constant 8 : i32
      %68 = arith.muli %0, %c8_i32_26 : i32
      %c0_i32_27 = arith.constant 0 : i32
      %c8_i32_28 = arith.constant 8 : i32
      %69 = arith.addi %c0_i32_27, %c8_i32_28 : i32
      %c1_i32_29 = arith.constant 1 : i32
      scf.for %arg11 = %c0_i32_27 to %69 step %c1_i32_29  : i32 {
        %c1_i32_31 = arith.constant 1 : i32
        %70 = arith.muli %arg11, %c1_i32_31 : i32
        %c0_i32_32 = arith.constant 0 : i32
        %71 = arith.addi %c0_i32_32, %70 : i32
        %72 = arith.addi %67, %71 : i32
        %73 = arith.index_cast %72 : i32 to index
        %74 = memref.load %arg2[%73] : memref<16xi32, #tpu.memory_space<smem>>
        %75 = arith.addi %68, %71 : i32
        %c0_i32_33 = arith.constant 0 : i32
        %76 = tpu.memref_slice %arg3[%74, %c0_i32_33] : memref<64x128xf32, #tpu.memory_space<any>> -> memref<1x128xf32, #tpu.memory_space<any>>
        %77 = tpu.memref_squeeze %76 : memref<1x128xf32, #tpu.memory_space<any>> -> memref<128xf32, #tpu.memory_space<any>>
        %c0_i32_34 = arith.constant 0 : i32
        %78 = tpu.memref_slice %arg9[%75, %c0_i32_34] : memref<16x128xf32, #tpu.memory_space<vmem>> -> memref<1x128xf32, #tpu.memory_space<vmem>>
        %79 = tpu.memref_squeeze %78 : memref<1x128xf32, #tpu.memory_space<vmem>> -> memref<128xf32, #tpu.memory_space<vmem>>
        %80 = tpu.memref_slice %arg10[%0] : memref<2x!tpu.dma_semaphore, #tpu.memory_space<semaphore_mem>> -> memref<1x!tpu.dma_semaphore, #tpu.memory_space<semaphore_mem>>
        %81 = tpu.memref_squeeze %80 : memref<1x!tpu.dma_semaphore, #tpu.memory_space<semaphore_mem>> -> memref<!tpu.dma_semaphore, #tpu.memory_space<semaphore_mem>>
        tpu.enqueue_dma source(%77 : memref<128xf32, #tpu.memory_space<any>>) target(%79 : memref<128xf32, #tpu.memory_space<vmem>>) target_semaphore(%81 : memref<!tpu.dma_semaphore, #tpu.memory_space<semaphore_mem>>)
      }
      %c8_i32_30 = arith.constant 8 : i32
    } else {
    }
    %c1_i32 = arith.constant 1 : i32
    %4 = arith.addi %arg1, %c1_i32 : i32
    %c1_i32_1 = arith.constant 1 : i32
    %5 = arith.cmpi slt, %4, %c1_i32_1 : i32
    %6 = arith.extui %5 : i1 to i32
    %c0_i32_2 = arith.constant 0 : i32
    %7 = arith.cmpi ne, %6, %c0_i32_2 : i32
    scf.if %7 {
      %c1_i32_24 = arith.constant 1 : i32
      %66 = arith.addi %arg1, %c1_i32_24 : i32
      %c1_i32_25 = arith.constant 1 : i32
      %67 = arith.subi %c1_i32_25, %0 : i32
      %c8_i32_26 = arith.constant 8 : i32
      %68 = arith.muli %arg0, %c8_i32_26 : i32
      %c8_i32_27 = arith.constant 8 : i32
      %69 = arith.muli %66, %c8_i32_27 : i32
      %70 = arith.addi %68, %69 : i32
      %c8_i32_28 = arith.constant 8 : i32
      %71 = arith.muli %67, %c8_i32_28 : i32
      %c0_i32_29 = arith.constant 0 : i32
      %c8_i32_30 = arith.constant 8 : i32
      %72 = arith.addi %c0_i32_29, %c8_i32_30 : i32
      %c1_i32_31 = arith.constant 1 : i32
      scf.for %arg11 = %c0_i32_29 to %72 step %c1_i32_31  : i32 {
        %c1_i32_33 = arith.constant 1 : i32
        %73 = arith.muli %arg11, %c1_i32_33 : i32
        %c0_i32_34 = arith.constant 0 : i32
        %74 = arith.addi %c0_i32_34, %73 : i32
        %75 = arith.addi %70, %74 : i32
        %76 = arith.index_cast %75 : i32 to index
        %77 = memref.load %arg2[%76] : memref<16xi32, #tpu.memory_space<smem>>
        %78 = arith.addi %71, %74 : i32
        %c0_i32_35 = arith.constant 0 : i32
        %79 = tpu.memref_slice %arg3[%77, %c0_i32_35] : memref<64x128xf32, #tpu.memory_space<any>> -> memref<1x128xf32, #tpu.memory_space<any>>
        %80 = tpu.memref_squeeze %79 : memref<1x128xf32, #tpu.memory_space<any>> -> memref<128xf32, #tpu.memory_space<any>>
        %c0_i32_36 = arith.constant 0 : i32
        %81 = tpu.memref_slice %arg9[%78, %c0_i32_36] : memref<16x128xf32, #tpu.memory_space<vmem>> -> memref<1x128xf32, #tpu.memory_space<vmem>>
        %82 = tpu.memref_squeeze %81 : memref<1x128xf32, #tpu.memory_space<vmem>> -> memref<128xf32, #tpu.memory_space<vmem>>
        %83 = tpu.memref_slice %arg10[%67] : memref<2x!tpu.dma_semaphore, #tpu.memory_space<semaphore_mem>> -> memref<1x!tpu.dma_semaphore, #tpu.memory_space<semaphore_mem>>
        %84 = tpu.memref_squeeze %83 : memref<1x!tpu.dma_semaphore, #tpu.memory_space<semaphore_mem>> -> memref<!tpu.dma_semaphore, #tpu.memory_space<semaphore_mem>>
        tpu.enqueue_dma source(%80 : memref<128xf32, #tpu.memory_space<any>>) target(%82 : memref<128xf32, #tpu.memory_space<vmem>>) target_semaphore(%84 : memref<!tpu.dma_semaphore, #tpu.memory_space<semaphore_mem>>)
      }
      %c8_i32_32 = arith.constant 8 : i32
    } else {
    }
    %c8_i32 = arith.constant 8 : i32
    %8 = arith.muli %0, %c8_i32 : i32
    %9 = tpu.assume_multiple %8, 8 : i32
    %c0_i32_3 = arith.constant 0 : i32
    %c0_i32_4 = arith.constant 0 : i32
    %10 = tpu.memref_slice %arg3[%c0_i32_3, %c0_i32_4] : memref<64x128xf32, #tpu.memory_space<any>> -> memref<8x128xf32, #tpu.memory_space<any>>
    %c0_i32_5 = arith.constant 0 : i32
    %11 = tpu.memref_slice %arg9[%9, %c0_i32_5] : memref<16x128xf32, #tpu.memory_space<vmem>> -> memref<8x128xf32, #tpu.memory_space<vmem>>
    %12 = tpu.memref_slice %arg10[%0] : memref<2x!tpu.dma_semaphore, #tpu.memory_space<semaphore_mem>> -> memref<1x!tpu.dma_semaphore, #tpu.memory_space<semaphore_mem>>
    %13 = tpu.memref_squeeze %12 : memref<1x!tpu.dma_semaphore, #tpu.memory_space<semaphore_mem>> -> memref<!tpu.dma_semaphore, #tpu.memory_space<semaphore_mem>>
    tpu.wait_dma2 semaphore(%13 : memref<!tpu.dma_semaphore, #tpu.memory_space<semaphore_mem>>) src(%10 : memref<8x128xf32, #tpu.memory_space<any>>) dst(%11 : memref<8x128xf32, #tpu.memory_space<vmem>>)
    %c8_i32_6 = arith.constant 8 : i32
    %14 = arith.muli %arg1, %c8_i32_6 : i32
    %15 = tpu.assume_multiple %14, 8 : i32
    %16 = arith.index_cast %15 : i32 to index
    %c0 = arith.constant 0 : index
    %17 = vector.load %arg4[%16, %c0] : memref<16x128xf32, #tpu.memory_space<vmem>>, vector<8x128xf32>
    %18 = arith.index_cast %9 : i32 to index
    %c0_7 = arith.constant 0 : index
    %19 = vector.load %arg9[%18, %c0_7] : memref<16x128xf32, #tpu.memory_space<vmem>>, vector<8x128xf32>
    %20 = arith.addf %19, %17 : vector<8x128xf32>
    %c0_8 = arith.constant 0 : index
    %c0_9 = arith.constant 0 : index
    %c0_10 = arith.constant 0 : index
    %21 = vector.load %arg7[%c0_8, %c0_9, %c0_10] : memref<1x8x1xi32, #tpu.memory_space<vmem>>, vector<1x8x1xi32>
    %22 = vector.shape_cast %21 : vector<1x8x1xi32> to vector<8x1xi32>
    %c0_11 = arith.constant 0 : index
    %c0_12 = arith.constant 0 : index
    %23 = vector.load %arg5[%c0_11, %c0_12] : memref<2x128xf32, #tpu.memory_space<vmem>>, vector<2x128xf32>
    %c0_i32_13 = arith.constant 0 : i32
    %24 = vector.broadcast %c0_i32_13 : i32 to vector<8x1xi32>
    %25 = arith.cmpi eq, %22, %24 : vector<8x1xi32>
    %26 = vector.extract_strided_slice %23 {offsets = [0, 0], sizes = [1, 128], strides = [1, 1]} : vector<2x128xf32> to vector<1x128xf32>
    %27 = vector.broadcast %26 : vector<1x128xf32> to vector<8x128xf32>
    %28 = arith.addf %20, %27 : vector<8x128xf32>
    %29 = vector.shape_cast %25 : vector<8x1xi1> to vector<8x1xi1>
    %30 = vector.broadcast %29 : vector<8x1xi1> to vector<8x128xi1>
    %31 = arith.select %30, %28, %20 : vector<8x128xi1>, vector<8x128xf32>
    %c1_i32_14 = arith.constant 1 : i32
    %32 = vector.broadcast %c1_i32_14 : i32 to vector<8x1xi32>
    %33 = arith.cmpi eq, %22, %32 : vector<8x1xi32>
    %34 = vector.extract_strided_slice %23 {offsets = [1, 0], sizes = [1, 128], strides = [1, 1]} : vector<2x128xf32> to vector<1x128xf32>
    %35 = vector.broadcast %34 : vector<1x128xf32> to vector<8x128xf32>
    %36 = arith.addf %31, %35 : vector<8x128xf32>
    %37 = vector.shape_cast %33 : vector<8x1xi1> to vector<8x1xi1>
    %38 = vector.broadcast %37 : vector<8x1xi1> to vector<8x128xi1>
    %39 = arith.select %38, %36, %31 : vector<8x128xi1>, vector<8x128xf32>
    %cst = arith.constant dense<0.000000e+00> : vector<8xf32>
    %40 = vector.multi_reduction <add>, %39, %cst [1] : vector<8x128xf32> to vector<8xf32>
    %41 = vector.shape_cast %40 : vector<8xf32> to vector<8x1xf32>
    %cst_15 = arith.constant 1.280000e+02 : f32
    %42 = vector.broadcast %cst_15 : f32 to vector<8x1xf32>
    %43 = arith.divf %41, %42 : vector<8x1xf32>
    %44 = vector.broadcast %43 : vector<8x1xf32> to vector<8x128xf32>
    %45 = arith.subf %39, %44 : vector<8x128xf32>
    %46 = arith.mulf %45, %45 : vector<8x128xf32>
    %cst_16 = arith.constant dense<0.000000e+00> : vector<8xf32>
    %47 = vector.multi_reduction <add>, %46, %cst_16 [1] : vector<8x128xf32> to vector<8xf32>
    %48 = vector.shape_cast %47 : vector<8xf32> to vector<8x1xf32>
    %cst_17 = arith.constant 1.280000e+02 : f32
    %49 = vector.broadcast %cst_17 : f32 to vector<8x1xf32>
    %50 = arith.divf %48, %49 : vector<8x1xf32>
    %cst_18 = arith.constant 9.99999996E-13 : f32
    %51 = vector.broadcast %cst_18 : f32 to vector<8x1xf32>
    %52 = arith.addf %50, %51 : vector<8x1xf32>
    %53 = math.rsqrt %52 : vector<8x1xf32>
    %c0_19 = arith.constant 0 : index
    %c0_20 = arith.constant 0 : index
    %54 = vector.load %arg6[%c0_19, %c0_20] : memref<2x128xf32, #tpu.memory_space<vmem>>, vector<2x128xf32>
    %55 = vector.broadcast %53 : vector<8x1xf32> to vector<8x128xf32>
    %56 = arith.mulf %45, %55 : vector<8x128xf32>
    %57 = vector.extract_strided_slice %54 {offsets = [0, 0], sizes = [1, 128], strides = [1, 1]} : vector<2x128xf32> to vector<1x128xf32>
    %58 = vector.broadcast %57 : vector<1x128xf32> to vector<8x128xf32>
    %59 = arith.mulf %56, %58 : vector<8x128xf32>
    %60 = vector.extract_strided_slice %54 {offsets = [1, 0], sizes = [1, 128], strides = [1, 1]} : vector<2x128xf32> to vector<1x128xf32>
    %61 = vector.broadcast %60 : vector<1x128xf32> to vector<8x128xf32>
    %62 = arith.addf %59, %61 : vector<8x128xf32>
    %c0_21 = arith.constant 0 : index
    %c0_22 = arith.constant 0 : index
    %c0_23 = arith.constant 0 : index
    %63 = vector.load %arg8[%c0_21, %c0_22, %c0_23] : memref<1x8x128xf32, #tpu.memory_space<vmem>>, vector<1x8x128xf32>
    %64 = vector.shape_cast %63 : vector<1x8x128xf32> to vector<8x128xf32>
    %65 = vector.shape_cast %62 : vector<8x128xf32> to vector<1x8x128xf32>
    tpu.vector_store %arg8[%c0_21, %c0_22, %c0_23], %65 {strides = array<i32>} : memref<1x8x128xf32, #tpu.memory_space<vmem>>, vector<1x8x128xf32>,
    return
  }
  func.func @transform_1(%arg0: i32, %arg1: i32, %arg2: memref<16xi32, #tpu.memory_space<smem>>) -> (i32, i32) {
    %c0_i32 = arith.constant 0 : i32
    %c0_i32_0 = arith.constant 0 : i32
    %c0_i32_1 = arith.constant 0 : i32
    return %c0_i32, %c0_i32_0 : i32, i32
  }
  func.func @transform_2(%arg0: i32, %arg1: i32, %arg2: memref<16xi32, #tpu.memory_space<smem>>) -> (i32, i32) {
    %c0_i32 = arith.constant 0 : i32
    %c0_i32_0 = arith.constant 0 : i32
    %c0_i32_1 = arith.constant 0 : i32
    return %c0_i32, %c0_i32_0 : i32, i32
  }
  func.func @transform_3(%arg0: i32, %arg1: i32, %arg2: memref<16xi32, #tpu.memory_space<smem>>) -> (i32, i32) {
    %c0_i32 = arith.constant 0 : i32
    %c0_i32_0 = arith.constant 0 : i32
    %c0_i32_1 = arith.constant 0 : i32
    return %c0_i32, %c0_i32_0 : i32, i32
  }
  func.func @transform_4(%arg0: i32, %arg1: i32, %arg2: memref<16xi32, #tpu.memory_space<smem>>) -> (i32, i32, i32) {
    %c0_i32 = arith.constant 0 : i32
    %c0_i32_0 = arith.constant 0 : i32
    return %arg0, %arg1, %c0_i32 : i32, i32, i32
  }
  func.func @transform_5(%arg0: i32, %arg1: i32, %arg2: memref<16xi32, #tpu.memory_space<smem>>) -> (i32, i32, i32) {
    %c0_i32 = arith.constant 0 : i32
    %c0_i32_0 = arith.constant 0 : i32
    return %arg0, %arg1, %c0_i32 : i32, i32, i32
  }
}

</mosaic_0001>

<llo_original>
// kernel: tpu_custom_call.1
$region0: #{tpu_custom_call.1}
  #allocation0 [shape = 'u32[]', space=smem, size = 0x4, offset = 0x4, fixed_abs, tag = 'smem constant byte address 0x4 - core index']
  #allocation1 [shape = 'u32[144,128]{1,0:T(1,128)}', space=vmem, size = 0x12000, scoped, tag = 'internal scratch']
  #allocation2 [shape = 'f32[16,128]{1,0:T(8,128)}', space=vmem, size = 0x2000, scoped, tag = 'scratch operand']
  #allocation3 [shape = 's32[2]{0}', space=sflag, size = 0x8, scoped, tag = 'scratch operand']
  #allocation4 [shape = 's32[1]{0}', space=sflag, size = 0x4, scoped, tag = 'scoped memory for tpu_custom_call.1']
  #allocation5 [shape = 'u8[512]{0}', space=smem, size = 0x200, scoped, tag = 'prefetched SMEM operand 0']
  #allocation8 [shape = 's32[]', space=sflag, size = 0x4, offset = 0, fixed_abs, tag = 'sflag constant byte address 0x0 - dummy sync flag']
  #allocation9 [shape = 's32[]', space=sflag, size = 0x4, offset = 0, fixed_abs, tag = 'sflag constant byte address 0x0 - dummy sync flag']
  #allocation10 [shape = 'u32[]', space=smem, size = 0x4, offset = 0x44, fixed_abs, tag = 'smem constant byte address 0x44 - assertion arg 0']
  #allocation11 [shape = 'u32[]', space=smem, size = 0x4, offset = 0x48, fixed_abs, tag = 'smem constant byte address 0x48 - assertion arg 1']
  #allocation12 [shape = 's32[]', space=sflag, size = 0x4, offset = 0, fixed_abs, tag = 'sflag constant byte address 0x0 - dummy sync flag']
  #allocation13 [shape = 's32[]', space=sflag, size = 0x4, offset = 0, fixed_abs, tag = 'sflag constant byte address 0x0 - dummy sync flag']
  %s0 = inlined_call_operand.vmem [shape: s32[16], index: 0, kind: input, shape index: {}]
  %s1 = inlined_call_operand.hbm [shape: f32[64,128], index: 1, kind: input, shape index: {}]
  %s2 = inlined_call_operand.vmem [shape: f32[16,128], index: 2, kind: input, shape index: {}]
  %s3 = inlined_call_operand.vmem [shape: f32[2,128], index: 3, kind: input, shape index: {}]
  %s4 = inlined_call_operand.vmem [shape: f32[2,128], index: 4, kind: input, shape index: {}]
  %s5 = inlined_call_operand.vmem [shape: s32[2,8,1], index: 5, kind: input, shape index: {}]
  %s6 = inlined_call_operand.hbm [shape: f32[2,8,128], index: 6, kind: output, shape index: {}]
  %s7 = sld [smem:[#allocation0]]
  $region79: #{tpu_custom_call.1} parent=0
    _
  %s9 = ssub.s32 1, %s7
  %s10 = scalar_select 0, %s9, %s7
  %s11 = sshll.u32 %s0, 4
  %s12 = int_to_ptr.vmem [resolvable:$true] %s11
  %14 = dma.vmem_to_smem %s12, 16, [#allocation5], [#allocation4]
  %15 = dma.done [#allocation4], 16
  %16 = sfence
  $region1: #{tpu_custom_call.1} parent=0
    #allocation6 [shape = 'u8[8192]{0}', space=vmem, size = 0x2000, scoped, tag = 'output window, operand 0']
    #allocation7 [shape = 's32[2]{0}', space=sflag, size = 0x8, scoped, tag = 'scoped memory for tpu_custom_call.1']
    %17 = vsyncpa [#allocation7], 0
    %s18 = scalar_lea.sflag [#allocation7], 1
    %19 = vsyncpa %s18, 0
    loop: start=0, step=1, limit=4
    $region2: #{tpu_custom_call.1} parent=1 // loop_pre_header
      _
    $region3: #{tpu_custom_call.1} parent=1 // loop_header
      %s21 = sphi 0, %s25
      %p22 = scmp.ge.s32.totalorder %s21, 4
      %s28 = sphi 0, %s40
      %s29 = sphi 0, %s36
      %s30 = sphi 0, %s28
      %s31 = sphi 0, %s29
      %s32 = sphi 0, %s30
      %s33 = sphi 0, %s31
      %s41 = sphi 0, %s41
      %s43 = sphi 0, %s41
      %s44 = sphi 0, %s43
      %s58 = sphi 0, %s44
      %s62 = sphi 0, %s62
      %s64 = sphi 0, %s62
      %s65 = sphi 0, %s64
      %s79 = sphi 0, %s65
      %s83 = sphi 0, %s83
      %s85 = sphi 0, %s83
      %s86 = sphi 0, %s85
      %s100 = sphi 0, %s86
      %s108 = sphi 0, %s110
      %s111 = sphi 0, %s108
      %s112 = sphi 0, %s111
      %s128 = sphi 0, %s112
      %s136 = sphi 0, %s138
      %s139 = sphi 0, %s136
      %s140 = sphi 0, %s139
      %s156 = sphi 0, %s140
    $region4: #{tpu_custom_call.1} parent=1 // loop_header_branch
      %24 = sbr.rel (%p22) target = $region8
    $region5: #{tpu_custom_call.1} parent=1 // loop_body
      %s26 = ssub.s32 %s21, 1
      %s27 = ssub.s32 %s21, 2
      %s34 = sadd.s32 1, %s29
      %p35 = scmp.ge.s32.totalorder %s34, 1
      %s36 = scalar_select %p35, 0, %s34
      %s37 = sadd.s32 1, %s28
      %s38 = scalar_select %p35, %s37, %s28
      %p39 = scmp.ge.s32.totalorder %s38, 2
      %s40 = scalar_select %p39, 0, %s38
      %s42 = sadd.s32 %s41, 1
      %p45 = scmp.eq.s32.totalorder %s21, 1
      %p46 = scmp.ne.s32.totalorder %s41, %s43
      %p47 = scmp.eq.s32.totalorder %s21, 0
      %p48 = por %p46, %p47
      %p49 = scmp.ne.s32.totalorder %s41, %s43
      %p50 = scmp.eq.s32.totalorder %s26, 1
      %p51 = por %p49, %p50
      %p52 = scmp.ne.s32.totalorder %s43, %s44
      %p53 = scmp.eq.s32.totalorder %s26, 0
      %p54 = por %p52, %p53
      %p55 = scmp.ne.s32.totalorder %s43, %s44
      %p56 = scmp.eq.s32.totalorder %s27, 1
      %p57 = por %p55, %p56
      %p59 = scmp.ne.s32.totalorder %s44, %s58
      %p60 = scmp.eq.s32.totalorder %s27, 0
      %p61 = por %p59, %p60
      %s63 = sadd.s32 %s62, 1
      %p66 = scmp.eq.s32.totalorder %s21, 1
      %p67 = scmp.ne.s32.totalorder %s62, %s64
      %p68 = scmp.eq.s32.totalorder %s21, 0
      %p69 = por %p67, %p68
      %p70 = scmp.ne.s32.totalorder %s62, %s64
      %p71 = scmp.eq.s32.totalorder %s26, 1
      %p72 = por %p70, %p71
      %p73 = scmp.ne.s32.totalorder %s64, %s65
      %p74 = scmp.eq.s32.totalorder %s26, 0
      %p75 = por %p73, %p74
      %p76 = scmp.ne.s32.totalorder %s64, %s65
      %p77 = scmp.eq.s32.totalorder %s27, 1
      %p78 = por %p76, %p77
      %p80 = scmp.ne.s32.totalorder %s65, %s79
      %p81 = scmp.eq.s32.totalorder %s27, 0
      %p82 = por %p80, %p81
      %s84 = sadd.s32 %s83, 1
      %p87 = scmp.eq.s32.totalorder %s21, 1
      %p88 = scmp.ne.s32.totalorder %s83, %s85
      %p89 = scmp.eq.s32.totalorder %s21, 0
      %p90 = por %p88, %p89
      %p91 = scmp.ne.s32.totalorder %s83, %s85
      %p92 = scmp.eq.s32.totalorder %s26, 1
      %p93 = por %p91, %p92
      %p94 = scmp.ne.s32.totalorder %s85, %s86
      %p95 = scmp.eq.s32.totalorder %s26, 0
      %p96 = por %p94, %p95
      %p97 = scmp.ne.s32.totalorder %s85, %s86
      %p98 = scmp.eq.s32.totalorder %s27, 1
      %p99 = por %p97, %p98
      %p101 = scmp.ne.s32.totalorder %s86, %s100
      %p102 = scmp.eq.s32.totalorder %s27, 0
      %p103 = por %p101, %p102
      %s104 = ssub.s32 %s28, %s40
      %s105 = ssub.s32 %s29, %s36
      %s106 = sor.u32 %s104, %s105
      %p107 = scmp.eq.s32.totalorder %s106, 0
      %s109 = sadd.s32 %s108, 1
      %s110 = scalar_select %p107, %s108, %s109
      %p113 = pneg %p107
      %p114 = scmp.eq.s32.totalorder %s21, 1
      %p115 = por %p113, %p114
      %p116 = scmp.ne.s32.totalorder %s108, %s111
      %p117 = scmp.eq.s32.totalorder %s21, 0
      %p118 = por %p116, %p117
      %p119 = scmp.ne.s32.totalorder %s108, %s111
      %p120 = scmp.eq.s32.totalorder %s26, 1
      %p121 = por %p119, %p120
      %p122 = scmp.ne.s32.totalorder %s111, %s112
      %p123 = scmp.eq.s32.totalorder %s26, 0
      %p124 = por %p122, %p123
      %p125 = scmp.ne.s32.totalorder %s111, %s112
      %p126 = scmp.eq.s32.totalorder %s27, 1
      %p127 = por %p125, %p126
      %p129 = scmp.ne.s32.totalorder %s112, %s128
      %p130 = scmp.eq.s32.totalorder %s27, 0
      %p131 = por %p129, %p130
      %s132 = ssub.s32 %s28, %s40
      %s133 = ssub.s32 %s29, %s36
      %s134 = sor.u32 %s132, %s133
      %p135 = scmp.eq.s32.totalorder %s134, 0
      %s137 = sadd.s32 %s136, 1
      %s138 = scalar_select %p135, %s136, %s137
      %p141 = pneg %p135
      %p142 = scmp.eq.s32.totalorder %s21, 1
      %p143 = por %p141, %p142
      %p144 = scmp.ne.s32.totalorder %s136, %s139
      %p145 = scmp.eq.s32.totalorder %s21, 0
      %p146 = por %p144, %p145
      %p147 = scmp.ne.s32.totalorder %s136, %s139
      %p148 = scmp.eq.s32.totalorder %s26, 1
      %p149 = por %p147, %p148
      %p150 = scmp.ne.s32.totalorder %s139, %s140
      %p151 = scmp.eq.s32.totalorder %s26, 0
      %p152 = por %p150, %p151
      %p153 = scmp.ne.s32.totalorder %s139, %s140
      %p154 = scmp.eq.s32.totalorder %s27, 1
      %p155 = por %p153, %p154
      %p157 = scmp.ne.s32.totalorder %s140, %s156
      %p158 = scmp.eq.s32.totalorder %s27, 0
      %p159 = por %p157, %p158
      %p160 = scmp.le.s32.totalorder 1, %s21
      %p161 = scmp.lt.s32.totalorder %s21, 3
      %p162 = pnand %p160, %p161
      %p163 = pneg %p162
      // Predicated region
      $region9: #{tpu_custom_call.1} parent=5 // pred_check
        _
      $region10: #{tpu_custom_call.1} parent=5 // pred_check_branch
        %165 = sbr.rel (%p162) target = $region12
      $region11: #{tpu_custom_call.1} parent=5 // pred_region
        %s166 = ssub.s32 %s21, 1
        // Predicated region
        $region13: #{tpu_custom_call.1} parent=11 // pred_check
          %p167 = pneg %p54
        $region14: #{tpu_custom_call.1} parent=11 // pred_check_branch
          %169 = sbr.rel (%p167) target = $region16
        $region15: #{tpu_custom_call.1} parent=11 // pred_region
          _
        $region16: #{tpu_custom_call.1} parent=11 // pred_fallthru
          _
        // Predicated region
        $region17: #{tpu_custom_call.1} parent=11 // pred_check
          %p170 = pneg %p75
        $region18: #{tpu_custom_call.1} parent=11 // pred_check_branch
          %172 = sbr.rel (%p170) target = $region20
        $region19: #{tpu_custom_call.1} parent=11 // pred_region
          _
        $region20: #{tpu_custom_call.1} parent=11 // pred_fallthru
          _
        // Predicated region
        $region21: #{tpu_custom_call.1} parent=11 // pred_check
          %p173 = pneg %p96
        $region22: #{tpu_custom_call.1} parent=11 // pred_check_branch
          %175 = sbr.rel (%p173) target = $region24
        $region23: #{tpu_custom_call.1} parent=11 // pred_region
          _
        $region24: #{tpu_custom_call.1} parent=11 // pred_fallthru
          _
      $region12: #{tpu_custom_call.1} parent=5 // pred_fallthru
        _
      %p176 = scmp.lt.s32.totalorder %s21, 2
      // Predicated region
      $region25: #{tpu_custom_call.1} parent=5 // pred_check
        %p177 = pneg %p176
      $region26: #{tpu_custom_call.1} parent=5 // pred_check_branch
        %179 = sbr.rel (%p177) target = $region28
      $region27: #{tpu_custom_call.1} parent=5 // pred_region
        // Predicated region
        $region29: #{tpu_custom_call.1} parent=27 // pred_check
          %p180 = pneg %p118
        $region30: #{tpu_custom_call.1} parent=27 // pred_check_branch
          %182 = sbr.rel (%p180) target = $region32
        $region31: #{tpu_custom_call.1} parent=27 // pred_region
          %p183 = scmp.lt.s32.totalorder %s28, 1
          %s184 = scalar_select %p183, %s28, 1
          %p185 = scmp.lt.s32.totalorder %s29, 0
          %s186 = scalar_select %p185, %s29, 0
          %s187 = sadd.s32 %s186, %s184
          %s188 = smul.addr %s187, 8
          %s189 = scalar_lea.vmem %s5, %s188
        $region32: #{tpu_custom_call.1} parent=27 // pred_fallthru
          _
      $region28: #{tpu_custom_call.1} parent=5 // pred_fallthru
        _
      %p190 = scmp.le.s32.totalorder 1, %s21
      %p191 = scmp.lt.s32.totalorder %s21, 3
      %p192 = pnand %p190, %p191
      %p193 = pneg %p192
      // Predicated region
      $region33: #{tpu_custom_call.1} parent=5 // pred_check
        _
      $region34: #{tpu_custom_call.1} parent=5 // pred_check_branch
        %195 = sbr.rel (%p192) target = $region36
      $region35: #{tpu_custom_call.1} parent=5 // pred_region
        %s196 = ssub.s32 %s21, 1
        %p197 = pneg %p54
        %p198 = pneg %p51
        %p199 = pneg %p75
        %p200 = pneg %p72
        %p201 = pneg %p96
        %p202 = pneg %p93
        %p203 = scmp.lt.s32.totalorder %s30, 1
        %s204 = scalar_select %p203, %s30, 1
        %p205 = scmp.lt.s32.totalorder %s31, 0
        %s206 = scalar_select %p205, %s31, 0
        %s207 = sadd.s32 %s206, %s204
        %s208 = smul.addr %s207, 8
        %s209 = scalar_lea.vmem %s5, %s208
        %p210 = pneg %p124
        %p211 = pneg %p121
        %p212 = pneg %p152
        %p213 = pneg %p149
        %s214 = sand.u32 %s139, 1
        %s215 = scalar_lea.sflag [#allocation7], %s214
        %s216 = sand.u32 %s139, 1
        %s217 = smul.addr %s216, 8
        %s218 = scalar_lea.vmem [#allocation6], %s217
        %p219 = scmp.lt.s32.totalorder %s30, 1
        %s220 = scalar_select %p219, %s30, 1
        %p221 = scmp.lt.s32.totalorder %s31, 0
        %s222 = scalar_select %p221, %s31, 0
        %s223 = sadd.s32 %s222, %s220
        %s224 = smul.addr %s223, 8
        %s225 = scalar_lea.vmem %s5, %s224
        %p226 = scmp.lt.s32.totalorder %s31, 0
        %s227 = ssub.s32 0, %s31
        %s228 = scalar_select %p226, %s227, %s31
        %s229 = sand.u32 %s228, 1
        %s230 = ssub.s32 0, %s229
        %s231 = scalar_select %p226, %s230, %s229
        %p232 = scmp.eq.s32.totalorder %s31, 0
        // Predicated region
        $region37: #{tpu_custom_call.1} parent=35 // pred_check
          %p233 = pneg %p232
        $region38: #{tpu_custom_call.1} parent=35 // pred_check_branch
          %235 = sbr.rel (%p233) target = $region40
        $region39: #{tpu_custom_call.1} parent=35 // pred_region
          %s236 = smul.u32 %s30, 8
          %s237 = smul.u32 %s231, 8
          loop: start=0, step=1, limit=8
          $region41: #{tpu_custom_call.1} parent=39 // loop_pre_header
            _
          $region42: #{tpu_custom_call.1} parent=39 // loop_header
            %s239 = sphi 0, %s243
            %p240 = scmp.ge.s32.totalorder %s239, 8
          $region43: #{tpu_custom_call.1} parent=39 // loop_header_branch
            %242 = sbr.rel (%p240) target = $region47
          $region44: #{tpu_custom_call.1} parent=39 // loop_body
            %s244 = sadd.s32 %s236, %s239
            %s245 = sld [smem:[#allocation5 + %s244]]
            %s246 = sadd.s32 %s237, %s239
            %s247 = smul.addr %s245, 16
            %s248 = scalar_lea.hbm %s1, %s247
            %s249 = scalar_lea.vmem [#allocation2], %s246
            %s250 = scalar_lea.sflag [#allocation3], %s231
            // Predicated region
            $region48: #{tpu_custom_call.1} parent=44 // pred_check
              _
            $region49: #{tpu_custom_call.1} parent=44 // pred_check_branch
              %252 = sbr.rel target = $region51
            $region50: #{tpu_custom_call.1} parent=44 // pred_region
              %253 = sst [smem:[#allocation10]] [#allocation9]
              %254 = sst [smem:[#allocation11]] [#allocation8]
            $region51: #{tpu_custom_call.1} parent=44 // pred_fallthru
              _
            %256 = shalt.err (0)
            %s258 = sshll.u32 %s249, 4
            %s259 = int_to_ptr.vmem [resolvable:$true] %s258
            %261 = dma.hbm_to_vmem [thread:$0]  %s248, 16, %s259, %s250
          $region45: #{tpu_custom_call.1} parent=39 // loop_footer
            %s243 = sadd.s32 1, %s239
          $region46: #{tpu_custom_call.1} parent=39 // loop_footer_branch
            %238 = sbr.rel target = $region42
          $region47: #{tpu_custom_call.1} parent=39 // loop_exit
            _
        $region40: #{tpu_custom_call.1} parent=35 // pred_fallthru
          _
        %s262 = sadd.s32 %s31, 1
        %p263 = scmp.lt.s32.totalorder %s262, 1
        // Predicated region
        $region52: #{tpu_custom_call.1} parent=35 // pred_check
          %p264 = pneg %p263
        $region53: #{tpu_custom_call.1} parent=35 // pred_check_branch
          %266 = sbr.rel (%p264) target = $region55
        $region54: #{tpu_custom_call.1} parent=35 // pred_region
          %s267 = ssub.s32 1, %s231
          %s268 = smul.u32 %s30, 8
          %s269 = smul.u32 %s262, 8
          %s270 = sadd.s32 %s268, %s269
          %s271 = smul.u32 %s267, 8
          loop: start=0, step=1, limit=8
          $region56: #{tpu_custom_call.1} parent=54 // loop_pre_header
            _
          $region57: #{tpu_custom_call.1} parent=54 // loop_header
            %s273 = sphi 0, %s277
            %p274 = scmp.ge.s32.totalorder %s273, 8
          $region58: #{tpu_custom_call.1} parent=54 // loop_header_branch
            %276 = sbr.rel (%p274) target = $region62
          $region59: #{tpu_custom_call.1} parent=54 // loop_body
            %s278 = sadd.s32 %s270, %s273
            %s279 = sld [smem:[#allocation5 + %s278]]
            %s280 = sadd.s32 %s271, %s273
            %s281 = smul.addr %s279, 16
            %s282 = scalar_lea.hbm %s1, %s281
            %s283 = scalar_lea.vmem [#allocation2], %s280
            %s284 = scalar_lea.sflag [#allocation3], %s267
            // Predicated region
            $region63: #{tpu_custom_call.1} parent=59 // pred_check
              _
            $region64: #{tpu_custom_call.1} parent=59 // pred_check_branch
              %286 = sbr.rel target = $region66
            $region65: #{tpu_custom_call.1} parent=59 // pred_region
              %287 = sst [smem:[#allocation10]] [#allocation13]
              %288 = sst [smem:[#allocation11]] [#allocation12]
            $region66: #{tpu_custom_call.1} parent=59 // pred_fallthru
              _
            %290 = shalt.err (0)
            %s292 = sshll.u32 %s283, 4
            %s293 = int_to_ptr.vmem [resolvable:$true] %s292
            %295 = dma.hbm_to_vmem [thread:$0]  %s282, 16, %s293, %s284
          $region60: #{tpu_custom_call.1} parent=54 // loop_footer
            %s277 = sadd.s32 1, %s273
          $region61: #{tpu_custom_call.1} parent=54 // loop_footer_branch
            %272 = sbr.rel target = $region57
          $region62: #{tpu_custom_call.1} parent=54 // loop_exit
            _
        $region55: #{tpu_custom_call.1} parent=35 // pred_fallthru
          _
        %s296 = smul.u32 %s231, 8
        %s297 = scalar_lea.vmem [#allocation2], %s296
        %s298 = scalar_lea.sflag [#allocation3], %s231
        %s299 = smul.u32 8, 1
        %s300 = sshll.u32 %s299, 4
        %301 = dma.done %s298, %s300
        %s302 = smul.u32 %s31, 8
        %s303 = scalar_lea.vmem %s2, %s302
        %v304 = vld [vmem:[%s303] sm:$0xff]
        %v305 = vld [vmem:[%s297] sm:$0xff]
        %v306 = vadd.f32 %v305, %v304
        %v307 = vld [vmem:[%s225] sm:$0xff]
        %v308 = vld [vmem:[%s3] sm:$0x3]
        %vm309 = vcmp.eq.s32.totalorder %v307, 0
        %v310 = vlaneseq
        %v311 = vshrl.u32 %v310, 7
        %v312 = vsub.s32 0, %v311
        %v313 = vrot.slane %v308, %v312
        %v314 = vadd.f32 %v306, %v313
        %v315 = vsel %vm309, 1, 0
        %316 = vset.pattern.permute.xlu0 0
        %317 = vperm.xlu0 %316, %v315
        %v318 = vpop.permute.xlu0 %317
        %vm319 = vcmp.eq.s32.totalorder %v318, 1
        %v320 = vsel %vm319, %v314, %v306
        %vm321 = vcmp.eq.s32.totalorder %v307, 1
        %v322 = vlaneseq
        %v323 = vshrl.u32 %v322, 7
        %v324 = vsub.s32 1, %v323
        %v325 = vrot.slane %v308, %v324
        %v326 = vadd.f32 %v320, %v325
        %v327 = vsel %vm321, 1, 0
        %328 = vset.pattern.permute.xlu0 0
        %329 = vperm.xlu0 %328, %v327
        %v330 = vpop.permute.xlu0 %329
        %vm331 = vcmp.eq.s32.totalorder %v330, 1
        %v332 = vsel %vm331, %v326, %v320
        %333 = vadd.xlane.f32.xlu0 %v332
        %v334 = vpop.xlane.xlu0 %333
        %v335 = vrcp.pop 128.0
        %v336 = vmul.f32 %v334, %v335
        %v337 = vsub.f32 %v332, %v336
        %v338 = vmul.f32 %v337, %v337
        %339 = vadd.xlane.f32.xlu0 %v338
        %v340 = vpop.xlane.xlu0 %339
        %v341 = vmul.f32 %v340, %v335
        %v342 = vadd.f32 %v341, 1e-12
        %v343 = vrsqrt.pop %v342
        %v344 = vld [vmem:[%s4] sm:$0x3]
        %v345 = vmul.f32 %v337, %v343
        %v346 = vlaneseq
        %v347 = vshrl.u32 %v346, 7
        %v348 = vsub.s32 0, %v347
        %v349 = vrot.slane %v344, %v348
        %v350 = vmul.f32 %v345, %v349
        %v351 = vlaneseq
        %v352 = vshrl.u32 %v351, 7
        %v353 = vsub.s32 1, %v352
        %v354 = vrot.slane %v344, %v353
        %v355 = vadd.f32 %v350, %v354
        %356 = vst [vmem:[%s218] sm:$0xff] %v355
        %s357 = sand.u32 %s139, 1
        %s358 = scalar_lea.sflag [#allocation7], %s357
        %s359 = sand.u32 %s139, 1
        %s360 = smul.addr %s359, 8
        %s361 = scalar_lea.vmem [#allocation6], %s360
        // Predicated region
        $region67: #{tpu_custom_call.1} parent=35 // pred_check
          %p362 = pneg %p149
        $region68: #{tpu_custom_call.1} parent=35 // pred_check_branch
          %364 = sbr.rel (%p362) target = $region70
        $region69: #{tpu_custom_call.1} parent=35 // pred_region
          %s366 = ssub.s32 128, 128
          %367 = vsyncadd %s358, %s366
          %s368 = sadd.s32 %s31, %s30
          %s369 = smul.addr %s368, 128
          %s370 = scalar_lea.hbm %s6, %s369
          %s372 = sshll.u32 %s361, 4
          %s373 = int_to_ptr.vmem [resolvable:$true] %s372
          %375 = dma.vmem_to_hbm [thread:$0]  %s373, 128, %s370, %s358
        $region70: #{tpu_custom_call.1} parent=35 // pred_fallthru
          _
      $region36: #{tpu_custom_call.1} parent=5 // pred_fallthru
        _
      %p376 = scmp.le.s32.totalorder 2, %s21
      // Predicated region
      $region71: #{tpu_custom_call.1} parent=5 // pred_check
        %p377 = pneg %p376
      $region72: #{tpu_custom_call.1} parent=5 // pred_check_branch
        %379 = sbr.rel (%p377) target = $region74
      $region73: #{tpu_custom_call.1} parent=5 // pred_region
        %s380 = ssub.s32 %s21, 2
        // Predicated region
        $region75: #{tpu_custom_call.1} parent=73 // pred_check
          %p381 = pneg %p155
        $region76: #{tpu_custom_call.1} parent=73 // pred_check_branch
          %383 = sbr.rel (%p381) target = $region78
        $region77: #{tpu_custom_call.1} parent=73 // pred_region
          %s384 = sand.u32 %s140, 1
          %s385 = scalar_lea.sflag [#allocation7], %s384
          %s386 = sand.u32 %s140, 1
          %s387 = smul.addr %s386, 8
          %s388 = scalar_lea.vmem [#allocation6], %s387
          %389 = dma.done %s385, 128
        $region78: #{tpu_custom_call.1} parent=73 // pred_fallthru
          _
      $region74: #{tpu_custom_call.1} parent=5 // pred_fallthru
        _
    $region6: #{tpu_custom_call.1} parent=1 // loop_footer
      %s25 = sadd.s32 1, %s21
    $region7: #{tpu_custom_call.1} parent=1 // loop_footer_branch
      %20 = sbr.rel target = $region3
    $region8: #{tpu_custom_call.1} parent=1 // loop_exit
      _
    %390 = vsyncpa [#allocation7], 1
    %s391 = scalar_lea.sflag [#allocation7], 1
    %392 = vsyncpa %s391, 1
  %393 = vsyncmov [#allocation3]
  %s394 = vpop.sfrf %393
  %p395 = scmp.eq.s32.totalorder %s394, 0
  %p396 = pneg %p395
  %398 = shalt.err (%p396)
  %s399 = scalar_lea.sflag [#allocation3], 1
  %400 = vsyncmov %s399
  %s401 = vpop.sfrf %400
  %p402 = scmp.eq.s32.totalorder %s401, 0
  %p403 = pneg %p402
  %405 = shalt.err (%p403)

</llo_original>
